<compile_context>
chip_gen: v7x
topology: tpu7x:2x2x1
jax: 0.10.0
libtpu: 0.0.40
codegen_flags: <defaults>
</compile_context>

<pallas_src>
import math
import functools

import numpy as np
import jax
import jax.numpy as jnp
from jax import lax
from jax.experimental import pallas as pl
from jax.experimental.pallas import tpu as pltpu


# ----------------------------- linear projection kernel -----------------------------

def _linear_kernel(x_ref, w_ref, b_ref, o_ref):
    # y = x @ w_t + b, with w_t pre-transposed to [Din, Dout] (MXU-native contraction).
    x = x_ref[...].astype(w_ref.dtype)
    y = jnp.dot(x, w_ref[...], preferred_element_type=jnp.float32)
    o_ref[...] = (y + b_ref[...]).astype(o_ref.dtype)


def pallas_linear(x, w_t, b, *, block_rows=512, out_dtype=jnp.float32):
    """y = x @ w_t + b.  x: [N, Din], w_t: [Din, Dout] (pre-transposed, typically bf16),
    b: [Dout].  Row-tiled; the weight / bias block index is constant across the grid so
    they stay resident in VMEM."""
    n, d_in = x.shape
    d_out = w_t.shape[1]
    tm = min(block_rows, n)
    return pl.pallas_call(
        _linear_kernel,
        grid=(pl.cdiv(n, tm),),
        in_specs=[
            pl.BlockSpec((tm, d_in), lambda i: (i, 0)),
            pl.BlockSpec((d_in, d_out), lambda i: (0, 0)),
            pl.BlockSpec((1, d_out), lambda i: (0, 0)),
        ],
        out_specs=pl.BlockSpec((tm, d_out), lambda i: (i, 0)),
        out_shape=jax.ShapeDtypeStruct((n, d_out), out_dtype),
        compiler_params=pltpu.CompilerParams(dimension_semantics=("parallel",)),
    )(x, w_t, b.reshape(1, -1).astype(jnp.float32))


# ----------------------------- fused head-merge + output projection -----------------------------

def _out_proj_kernel(x_ref, w_ref, b_ref, o_ref):
    # x_ref: [S, Dh] (one head, one batch), w_ref: [Dh, D] slice of Wo^T, o_ref: [S, D].
    # Output block index is independent of h (innermost axis), so it stays resident in
    # VMEM and we accumulate per-head partial products directly into it.
    y = jnp.dot(x_ref[...], w_ref[...], preferred_element_type=jnp.float32)
    h = pl.program_id(1)

    @pl.when(h == 0)
    def _():
        o_ref[...] = y + b_ref[...]

    @pl.when(h > 0)
    def _():
        o_ref[...] = o_ref[...] + y


def pallas_out_proj(x_bhsd, w_t, b):
    """out[b, s, :] = sum_h x[b, h, s, :] @ Wo^T[h*Dh:(h+1)*Dh, :] + bo.
    Fuses the [B,H,S,Dh] -> [B,S,D] head merge (no XLA transpose) into the projection."""
    B, H, S, Dh = x_bhsd.shape
    D = w_t.shape[1]
    return pl.pallas_call(
        _out_proj_kernel,
        grid=(B, H),
        in_specs=[
            pl.BlockSpec((None, None, S, Dh), lambda bi, h: (bi, h, 0, 0)),
            pl.BlockSpec((Dh, D), lambda bi, h: (h, 0)),
            pl.BlockSpec((1, D), lambda bi, h: (0, 0)),
        ],
        out_specs=pl.BlockSpec((None, S, D), lambda bi, h: (bi, 0, 0)),
        out_shape=jax.ShapeDtypeStruct((B, S, D), jnp.float32),
        compiler_params=pltpu.CompilerParams(
            dimension_semantics=("parallel", "arbitrary")),
    )(x_bhsd, w_t, b.reshape(1, -1).astype(jnp.float32))


# ----------------------------- relative shift -----------------------------

@functools.lru_cache(maxsize=None)
def _strided_roll_ok():
    """One-time probe: does pltpu.roll support a lane roll with a per-sublane stride and
    follow the np.roll sign convention this kernel relies on?  If not, the relative shift
    falls back to the (previously validated) log2(S) select-network path."""
    S, Wp = 8, 128

    def kern(x_ref, o_ref):
        o_ref[...] = pltpu.roll(x_ref[...], S, axis=1, stride=1, stride_axis=0)

    x = np.arange(S * Wp, dtype=np.float32).reshape(S, Wp)
    want = np.stack([np.roll(x[i], S + i) for i in range(S)])
    try:
        got = pl.pallas_call(
            kern, out_shape=jax.ShapeDtypeStruct((S, Wp), jnp.float32))(jnp.asarray(x))
        return bool(np.array_equal(np.asarray(jax.device_get(got)), want))
    except Exception:
        return False


def _rel_shift_rows(padded, S, use_roll):
    """padded: [rows, W] f32 with W % 128 == 0, W >= 2S, and the valid data in the last
    2S-1 columns (padded[i, W-(2S-1)+r] = raw[i, r]).  Returns [rows, S] with
    out[i, j] = raw[i, j - i + S - 1]."""
    if use_roll:
        # Row i needs a circular shift by (S + i) (np.roll convention); amounts stay in
        # [S, 2S-1] < W, and for j < S the result never wraps into the zero-padded prefix.
        # Single XLU pass -- no slice/concat copies, no per-bit selects.
        return pltpu.roll(padded, S, axis=1, stride=1, stride_axis=0)[:, :S]

    # Fallback: strip the pad, then log2(S) static rotations + per-row selects.
    W = padded.shape[-1]
    R = 2 * S - 1
    x = padded[:, W - R:]
    rows = x.shape[0]
    t = (S - 1) - lax.broadcasted_iota(jnp.int32, (rows, 1), 0)  # left-rotation amount
    shift = 1
    while shift < S:
        rotated = jnp.concatenate([x[:, shift:], x[:, :shift]], axis=1)
        x = jnp.where((t & shift) != 0, rotated, x)
        shift *= 2
    return x[:, :S]


# ----------------------------- disentangled attention kernel -----------------------------

def _attn_kernel(q_ref, k_ref, v_ref, pk_ref, pq_ref, out_ref, *score_refs,
                 inv_scale, use_roll):
    q = q_ref[...]     # [S, Dh]  bf16
    k = k_ref[...]     # [S, Dh]  bf16
    v = v_ref[...]     # [S, Dh]  bf16
    pk = pk_ref[...]   # [W, Dh]  bf16 (first W-(2S-1) rows are zero padding)
    pq = pq_ref[...]   # [W, Dh]  bf16
    S = q.shape[0]

    dnT = (((1,), (1,)), ((), ()))  # contract last dims: A @ B^T  (f32 accumulation)
    content = lax.dot_general(q, k, dnT, preferred_element_type=jnp.float32)   # [S, S]
    c2p = _rel_shift_rows(
        lax.dot_general(q, pk, dnT, preferred_element_type=jnp.float32), S, use_roll)
    # TODO(synk): the [S,S] transpose below could be folded into a sublane-direction
    #             strided roll instead of an XLU transpose.
    p2c = _rel_shift_rows(
        lax.dot_general(k, pq, dnT, preferred_element_type=jnp.float32), S, use_roll).T

    score = (content + c2p + p2c) * inv_scale                    # f32 softmax path
    score = score - jnp.max(score, axis=-1, keepdims=True)
    e = jnp.exp(score)
    attn = e * pl.reciprocal(jnp.sum(e, axis=-1, keepdims=True), approx=True)
    out = jnp.dot(attn.astype(v.dtype), v, preferred_element_type=jnp.float32)  # [S, Dh]

    out_ref[...] = out.astype(out_ref.dtype)
    if score_refs:  # side outputs gated behind `with_scores`
        attn_ref, c2p_ref, p2c_ref = score_refs
        attn_ref[...] = attn.astype(attn_ref.dtype)
        c2p_ref[...] = c2p.astype(c2p_ref.dtype)
        p2c_ref[...] = p2c.astype(p2c_ref.dtype)


def pallas_disentangled_attention(q, k, v, pk_pad, pq_pad, dim_scale, *,
                                  with_scores=True, score_dtype=jnp.bfloat16):
    """q, k, v: [B, H, S, Dh]; pk_pad, pq_pad: [H, W, Dh] left-zero-padded position
    projections with W a multiple of 128 and W >= 2S."""
    B, H, S, Dh = q.shape
    W = pk_pad.shape[1]
    assert W % 128 == 0 and W >= 2 * S
    use_roll = _strided_roll_ok()
    kernel = functools.partial(_attn_kernel, inv_scale=1.0 / dim_scale, use_roll=use_roll)

    # Grid (H, B): h outer, b inner -> the per-head pk/pq blocks keep the same block index
    # across the inner batch loop and stay resident in VMEM.  Both axes "parallel" so the
    # H*B tiles shard evenly across v7x's two TensorCores.
    # TODO(synk): add a flash-style query-tile grid axis for large S (needs windowed pq
    #             slices for p2c); per-tile VMEM here is O(S^2 + S*W).
    qkv_spec = pl.BlockSpec((None, None, S, Dh), lambda h, b: (b, h, 0, 0))
    pos_spec = pl.BlockSpec((None, W, Dh), lambda h, b: (h, 0, 0))
    ss_spec = pl.BlockSpec((None, None, S, S), lambda h, b: (b, h, 0, 0))

    out_specs = [qkv_spec]
    out_shapes = [jax.ShapeDtypeStruct((B, H, S, Dh), jnp.bfloat16)]
    if with_scores:
        out_specs += [ss_spec] * 3
        out_shapes += [jax.ShapeDtypeStruct((B, H, S, S), score_dtype)] * 3

    res = pl.pallas_call(
        kernel,
        grid=(H, B),
        in_specs=[qkv_spec, qkv_spec, qkv_spec, pos_spec, pos_spec],
        out_specs=tuple(out_specs),
        out_shape=tuple(out_shapes),
        compiler_params=pltpu.CompilerParams(
            dimension_semantics=("parallel", "parallel"),
            vmem_limit_bytes=48 * 1024 * 1024),
    )(q, k, v, pk_pad, pq_pad)
    return res if with_scores else res[0]


# ----------------------------- full forward (Pallas) -----------------------------

def rel_att_disentangle_pallas(params, query, key, value, pos_emb, heads, *,
                               with_scores=True, score_dtype=jnp.bfloat16):
    B, S, D = query.shape
    Dh = D // heads
    R = pos_emb.shape[0]
    assert R == 2 * S - 1, "replicate-pad branch of relative_shift unsupported"
    W = pl.cdiv(R, 128) * 128            # lane-aligned relative length (>= 2S since R is odd)
    dim_scale = math.sqrt(3 * D)
    cdt = jnp.bfloat16                   # MXU operand dtype (accumulation stays f32)

    def w_t(name):  # torch Linear weight [out, in] -> resident [in, out] bf16
        return jnp.asarray(params["W" + name]).T.astype(cdt)

    # q / k / v projections (bf16 outputs halve the HBM traffic of the head-split below).
    q = pallas_linear(query.reshape(B * S, D), w_t("q"), params["bq"], out_dtype=cdt)
    k = pallas_linear(key.reshape(B * S, D), w_t("k"), params["bk"], out_dtype=cdt)
    v = pallas_linear(value.reshape(B * S, D), w_t("v"), params["bv"], out_dtype=cdt)
    # TODO(synk): the [B,S,H,Dh] -> [B,H,S,Dh] head-split transposes are still XLA ops;
    #             folding them into the projection's out BlockSpec needs per-head lane
    #             blocks that violate the (8,128) rule at small Dh.
    q = q.reshape(B, S, heads, Dh).transpose(0, 2, 1, 3)
    k = k.reshape(B, S, heads, Dh).transpose(0, 2, 1, 3)
    v = v.reshape(B, S, heads, Dh).transpose(0, 2, 1, 3)

    # Fused position projections: one launch, one read of pos_emb.
    wp = jnp.concatenate([jnp.asarray(params["Wpk"]).T,
                          jnp.asarray(params["Wpq"]).T], axis=1).astype(cdt)   # [D, 2D]
    bp = jnp.concatenate([params["bpk"], params["bpq"]])                       # [2D]
    pos = pallas_linear(pos_emb, wp, bp, out_dtype=cdt)                        # [R, 2D]
    pk = pos[:, :D].reshape(R, heads, Dh).transpose(1, 0, 2)                   # [H, R, Dh]
    pq = pos[:, D:].reshape(R, heads, Dh).transpose(1, 0, 2)
    # Left-pad the relative axis to a lane multiple so the in-kernel relative shift is a
    # single strided roll that never wraps into garbage (pad rows contribute zeros).
    pk = jnp.pad(pk, ((0, 0), (W - R, 0), (0, 0)))
    pq = jnp.pad(pq, ((0, 0), (W - R, 0), (0, 0)))

    res = pallas_disentangled_attention(q, k, v, pk, pq, dim_scale,
                                        with_scores=with_scores, score_dtype=score_dtype)
    out_bhsd = res[0] if with_scores else res
    out = pallas_out_proj(out_bhsd, jnp.asarray(params["Wo"]).T.astype(cdt), params["bo"])
    # dropout(p=0.0) is the identity.
    if with_scores:
        return out, res[1], res[2], res[3]
    return out


# ----------------------------- pure-JAX reference (mirrors torch) -----------------------------

def _relative_shift_ref(score):
    S = score.shape[-2]
    score = jnp.pad(score, [(0, 0)] * (score.ndim - 1) + [(1, 0)])
    lead = score.shape[:-2]
    score = score.reshape(lead + (-1,))
    score = score[..., S:].reshape(lead + (S, -1))
    return score[..., :S]


def rel_att_disentangle_ref(params, query, key, value, pos_emb, heads):
    B, S, D = query.shape
    Dh = D // heads
    dim_scale = math.sqrt(3 * D)

    def lin(x, w, b):
        return x @ w.T + b

    q = lin(query, params["Wq"], params["bq"]).reshape(B, S, heads, Dh).transpose(0, 2, 1, 3)
    k = lin(key, params["Wk"], params["bk"]).reshape(B, S, heads, Dh).transpose(0, 2, 3, 1)
    v = lin(value, params["Wv"], params["bv"]).reshape(B, S, heads, Dh).transpose(0, 2, 1, 3)
    pk = lin(pos_emb, params["Wpk"], params["bpk"]).reshape(-1, heads, Dh)
    pq = lin(pos_emb, params["Wpq"], params["bpq"]).reshape(-1, heads, Dh)

    c2p = jnp.einsum('bhld,rhd->bhlr', q, pk)
    c2p = _relative_shift_ref(c2p)
    p2c = jnp.einsum('rhd,bhdl->bhrl', pq, k)
    p2c = jnp.swapaxes(_relative_shift_ref(jnp.swapaxes(p2c, 2, 3)), 2, 3)
    content = jnp.matmul(q, k)
    score = (content + c2p + p2c) / dim_scale
    attn = jax.nn.softmax(score, axis=-1)
    out = jnp.matmul(attn, v).transpose(0, 2, 1, 3).reshape(B, S, D)
    return lin(out, params["Wo"], params["bo"]), attn, c2p, p2c


# ----------------------------- main -----------------------------

if __name__ == "__main__":
    B, S, D, H = 2, 8, 32, 4
    R = 2 * S - 1

    root = jax.random.PRNGKey(0)
    keys = jax.random.split(root, 16)

    def w_init(kk, shape, scale):
        return jax.random.normal(kk, shape, jnp.float32) * scale

    params = {
        "Wq": w_init(keys[0], (D, D), 0.08),   "bq": w_init(keys[1], (D,), 0.02),
        "Wk": w_init(keys[2], (D, D), 0.08),   "bk": w_init(keys[3], (D,), 0.02),
        "Wv": w_init(keys[4], (D, D), 0.08),   "bv": w_init(keys[5], (D,), 0.02),
        "Wo": w_init(keys[6], (D, D), 0.08),   "bo": w_init(keys[7], (D,), 0.02),
        "Wpk": w_init(keys[8], (D, D), 0.08),  "bpk": w_init(keys[9], (D,), 0.02),
        "Wpq": w_init(keys[10], (D, D), 0.08), "bpq": w_init(keys[11], (D,), 0.02),
    }

    query = jax.random.normal(keys[12], (B, S, D), jnp.float32)
    key_in = jax.random.normal(keys[13], (B, S, D), jnp.float32)
    value = jax.random.normal(keys[14], (B, S, D), jnp.float32)
    pos_emb = jax.random.normal(keys[15], (R, D), jnp.float32)

    # Full module semantics (returns attn / c2p / p2c side outputs).
    out, attn, c2p, p2c = rel_att_disentangle_pallas(params, query, key_in, value, pos_emb, H)
    jax.block_until_ready((out, attn, c2p, p2c))

    # Optimized path with the side outputs gated off (no [B,H,S,S] HBM writebacks).
    out_fast = rel_att_disentangle_pallas(params, query, key_in, value, pos_emb, H,
                                          with_scores=False)
    jax.block_until_ready(out_fast)

    out_r, attn_r, c2p_r, p2c_r = rel_att_disentangle_ref(params, query, key_in, value,
                                                          pos_emb, H)

    assert out.shape == (B, S, D) and attn.shape == (B, H, S, S)
    f32 = jnp.float32
    assert bool(jnp.allclose(out, out_r, rtol=2e-2, atol=2e-2))
    assert bool(jnp.allclose(out_fast, out_r, rtol=2e-2, atol=2e-2))
    assert bool(jnp.allclose(attn.astype(f32), attn_r, rtol=2e-2, atol=2e-2))
    assert bool(jnp.allclose(c2p.astype(f32), c2p_r, rtol=2e-2, atol=2e-2))
    assert bool(jnp.allclose(p2c.astype(f32), p2c_r, rtol=2e-2, atol=2e-2))

    print("KERNEL_OK")
</pallas_src>

<mosaic_0001>
module attributes {stable_mosaic.version = 11 : i64} {
  func.func @_linear_kernel(%arg0: i32, %arg1: memref<16x32xf32, #tpu.memory_space<vmem>>, %arg2: memref<32x32xbf16, #tpu.memory_space<vmem>>, %arg3: memref<1x32xf32, #tpu.memory_space<vmem>>, %arg4: memref<16x32xbf16, #tpu.memory_space<vmem>>) attributes {dimension_semantics = [#tpu.dimension_semantics<parallel>], iteration_bounds = array<i64: 1>, scalar_prefetch = 0 : i64, scratch_operands = 0 : i64, tpu.core_type = #tpu.core_type<tc>, window_params = [{transform_indices = @transform_0, window_bounds = array<i64: 16, 32>}, {pipeline_mode = #tpu.pipeline_mode<synchronous>, transform_indices = @transform_1, window_bounds = array<i64: 32, 32>}, {pipeline_mode = #tpu.pipeline_mode<synchronous>, transform_indices = @transform_2, window_bounds = array<i64: 1, 32>}, {transform_indices = @transform_3, window_bounds = array<i64: 16, 32>}]} {
    %c0 = arith.constant 0 : index
    %c0_0 = arith.constant 0 : index
    %0 = vector.load %arg1[%c0, %c0_0] : memref<16x32xf32, #tpu.memory_space<vmem>>, vector<16x32xf32>
    %1 = arith.truncf %0 : vector<16x32xf32> to vector<16x32xbf16>
    %c0_1 = arith.constant 0 : index
    %c0_2 = arith.constant 0 : index
    %2 = vector.load %arg2[%c0_1, %c0_2] : memref<32x32xbf16, #tpu.memory_space<vmem>>, vector<32x32xbf16>
    %cst = arith.constant dense<0.000000e+00> : vector<16x32xf32>
    %3 = tpu.matmul %1, %2, %cst {dimension_numbers = #tpu.dot_dimension_numbers<[1], [0], [0], [1], [0, 0, 1, 1], [], []>} : vector<16x32xbf16>, vector<32x32xbf16>, vector<16x32xf32> -> vector<16x32xf32>
    %c0_3 = arith.constant 0 : index
    %c0_4 = arith.constant 0 : index
    %4 = vector.load %arg3[%c0_3, %c0_4] : memref<1x32xf32, #tpu.memory_space<vmem>>, vector<1x32xf32>
    %5 = vector.broadcast %4 : vector<1x32xf32> to vector<16x32xf32>
    %6 = arith.addf %3, %5 : vector<16x32xf32>
    %7 = arith.truncf %6 : vector<16x32xf32> to vector<16x32xbf16>
    %c0_5 = arith.constant 0 : index
    %c0_6 = arith.constant 0 : index
    %8 = vector.load %arg4[%c0_5, %c0_6] : memref<16x32xbf16, #tpu.memory_space<vmem>>, vector<16x32xbf16>
    tpu.vector_store %arg4[%c0_5, %c0_6], %7 {strides = array<i32>} : memref<16x32xbf16, #tpu.memory_space<vmem>>, vector<16x32xbf16>,
    return
  }
  func.func @transform_0(%arg0: i32) -> (i32, i32) {
    %c0_i32 = arith.constant 0 : i32
    %c0_i32_0 = arith.constant 0 : i32
    return %arg0, %c0_i32 : i32, i32
  }
  func.func @transform_1(%arg0: i32) -> (i32, i32) {
    %c0_i32 = arith.constant 0 : i32
    %c0_i32_0 = arith.constant 0 : i32
    %c0_i32_1 = arith.constant 0 : i32
    return %c0_i32, %c0_i32_0 : i32, i32
  }
  func.func @transform_2(%arg0: i32) -> (i32, i32) {
    %c0_i32 = arith.constant 0 : i32
    %c0_i32_0 = arith.constant 0 : i32
    %c0_i32_1 = arith.constant 0 : i32
    return %c0_i32, %c0_i32_0 : i32, i32
  }
  func.func @transform_3(%arg0: i32) -> (i32, i32) {
    %c0_i32 = arith.constant 0 : i32
    %c0_i32_0 = arith.constant 0 : i32
    return %arg0, %c0_i32 : i32, i32
  }
}

</mosaic_0001>

<llo_original>
// kernel: tpu_custom_call.1
$region0: #{tpu_custom_call.1}
  #allocation0 [shape = 'u32[]', space=smem, size = 0x4, offset = 0x4, fixed_abs, tag = 'smem constant byte address 0x4 - core index']
  #allocation1 [shape = 'u32[144,128]{1,0:T(1,128)}', space=vmem, size = 0x12000, scoped, tag = 'internal scratch']
  %s0 = inlined_call_operand.hbm [shape: f32[16,32], index: 0, kind: input, shape index: {}]
  %s1 = inlined_call_operand.hbm [shape: bf16[32,32], index: 1, kind: input, shape index: {}]
  %s2 = inlined_call_operand.vmem [shape: f32[1,32], index: 2, kind: input, shape index: {}]
  %s3 = inlined_call_operand.hbm [shape: bf16[16,32], index: 3, kind: output, shape index: {}]
  %s4 = sld [smem:[#allocation0]]
  $region30: #{tpu_custom_call.1} parent=0
    _
  %s6 = ssub.s32 1, %s4
  %s7 = scalar_select 0, %s6, %s4
  $region1: #{tpu_custom_call.1} parent=0
    #allocation2 [shape = 'u8[8192]{0}', space=vmem, size = 0x2000, scoped, tag = 'input window, operand 0, single buffered']
    #allocation3 [shape = 's32[1]{0}', space=sflag, size = 0x4, scoped, tag = 'scoped memory for tpu_custom_call.1']
    #allocation4 [shape = 's32[1]{0}', space=sflag, size = 0x4, scoped, tag = 'scoped memory for tpu_custom_call.1']
    #allocation5 [shape = 'u8[8192]{0}', space=vmem, size = 0x2000, scoped, tag = 'input window, operand 1, single buffered']
    #allocation6 [shape = 's32[1]{0}', space=sflag, size = 0x4, scoped, tag = 'scoped memory for tpu_custom_call.1']
    #allocation7 [shape = 'u8[4096]{0}', space=vmem, size = 0x1000, scoped, tag = 'output window, operand 0, single buffered']
    %8 = vsyncpa [#allocation3], 0
    %9 = vsyncpa [#allocation6], 0
    %10 = vsyncpa [#allocation4], 0
    // Predicated region
    $region2: #{tpu_custom_call.1} parent=1 // pred_check
      _
    $region3: #{tpu_custom_call.1} parent=1 // pred_check_branch
      %12 = sbr.rel (0) target = $region5
    $region4: #{tpu_custom_call.1} parent=1 // pred_region
      %s14 = ssub.s32 256, 256
      %15 = vsyncadd [#allocation3], %s14
      %s16 = sshll.u32 [#allocation2], 4
      %s17 = int_to_ptr.vmem [resolvable:$true] %s16
      %22 = dma.hbm_to_vmem [thread:$0]  %s0, 256, %s17, [#allocation3], 128, 128, 8
    $region5: #{tpu_custom_call.1} parent=1 // pred_fallthru
      _
    // Predicated region
    $region6: #{tpu_custom_call.1} parent=1 // pred_check
      _
    $region7: #{tpu_custom_call.1} parent=1 // pred_check_branch
      %24 = sbr.rel (0) target = $region9
    $region8: #{tpu_custom_call.1} parent=1 // pred_region
      %s26 = ssub.s32 256, 256
      %27 = vsyncadd [#allocation6], %s26
      %s28 = sshll.u32 [#allocation5], 4
      %s29 = int_to_ptr.vmem [resolvable:$true] %s28
      %34 = dma.hbm_to_vmem [thread:$0]  %s1, 256, %s29, [#allocation6], 64, 64, 4
    $region9: #{tpu_custom_call.1} parent=1 // pred_fallthru
      _
    // Predicated region
    $region10: #{tpu_custom_call.1} parent=1 // pred_check
      _
    $region11: #{tpu_custom_call.1} parent=1 // pred_check_branch
      %36 = sbr.rel (0) target = $region13
    $region12: #{tpu_custom_call.1} parent=1 // pred_region
      _
    $region13: #{tpu_custom_call.1} parent=1 // pred_fallthru
      _
    // Predicated region
    $region14: #{tpu_custom_call.1} parent=1 // pred_check
      _
    $region15: #{tpu_custom_call.1} parent=1 // pred_check_branch
      %38 = sbr.rel (0) target = $region17
    $region16: #{tpu_custom_call.1} parent=1 // pred_region
      %39 = dma.done [#allocation3], 256
    $region17: #{tpu_custom_call.1} parent=1 // pred_fallthru
      _
    // Predicated region
    $region18: #{tpu_custom_call.1} parent=1 // pred_check
      _
    $region19: #{tpu_custom_call.1} parent=1 // pred_check_branch
      %41 = sbr.rel (0) target = $region21
    $region20: #{tpu_custom_call.1} parent=1 // pred_region
      %42 = dma.done [#allocation6], 256
    $region21: #{tpu_custom_call.1} parent=1 // pred_fallthru
      _
    %v44 = vld [vmem:[#allocation2] sm:$0xff]
    %v45 = vld [vmem:[#allocation2 + $0x8] sm:$0xff]
    %v46 = vpack.c.bf16 %v45, %v44
    %v47 = vld [vmem:[#allocation5] sm:$0xf]
    %v48 = vld [vmem:[#allocation5 + $0x4] sm:$0xf]
    %v49 = vld [vmem:[#allocation5 + $0x8] sm:$0xf]
    %v50 = vld [vmem:[#allocation5 + $0xc] sm:$0xf]
    %v51 = vld [vmem:[%s2] sm:$0x1]
    %v53 = vlaneseq
    %v54 = vshrl.u32 %v53, 7
    %v55 = vsub.s32 0, %v54
    %v56 = vrot.slane %v51, %v55
    %v62 = vunpack.c.l.b16 %v47
    %v63 = vunpack.c.l.b16 %v48
    %v64 = vunpack.c.l.b16 %v49
    %v65 = vunpack.c.l.b16 %v50
    %v66 = vpack.c.b16 %v63, %v62
    %v67 = vpack.c.b16 %v65, %v64
    %vm70 = vcmask 261120
    %v72 = vsel %vm70, %v46, 0
    %74 = vmatprep.subr.bf16.mxu0 0
    %75 = vmatpush1.bf16.msra.mxu0 %v66
    %76 = vmatprep.subr.bf16.mxu0 0
    %77 = vmatpush1.bf16.msra.mxu0 %v67
    %78 = vmatprep.subr.bf16.mxu0 0
    %79 = vmatpush1.bf16.msra.mxu0 0
    %80 = vmatprep.subr.bf16.mxu0 0
    %81 = vmatpush1.bf16.msra.mxu0 0
    %82 = vmatprep.subr.bf16.mxu0 0
    %83 = vmatpush1.bf16.msra.mxu0 0
    %84 = vmatprep.subr.bf16.mxu0 0
    %85 = vmatpush1.bf16.msra.mxu0 0
    %86 = vmatprep.subr.bf16.mxu0 0
    %87 = vmatpush1.bf16.msra.mxu0 0
    %88 = vmatprep.subr.bf16.mxu0 0
    %89 = vmatpush1.bf16.msra.mxu0 0
    %90 = vmatprep.subr.bf16.mxu0 0
    %91 = vmatpush1.bf16.msra.mxu0 0
    %92 = vmatprep.subr.bf16.mxu0 0
    %93 = vmatpush1.bf16.msra.mxu0 0
    %94 = vmatprep.subr.bf16.mxu0 0
    %95 = vmatpush1.bf16.msra.mxu0 0
    %96 = vmatprep.subr.bf16.mxu0 0
    %97 = vmatpush1.bf16.msra.mxu0 0
    %98 = vmatprep.subr.bf16.mxu0 0
    %99 = vmatpush1.bf16.msra.mxu0 0
    %100 = vmatprep.subr.bf16.mxu0 0
    %101 = vmatpush1.bf16.msra.mxu0 0
    %102 = vmatprep.subr.bf16.mxu0 0
    %103 = vmatpush1.bf16.msra.mxu0 0
    %104 = vmatprep.subr.bf16.mxu0 0
    %105 = vmatpush1.bf16.msra.mxu0 0
    %106 = vmatprep.mubr.bf16.mxu0 0
    %107 = vmatmul.mubr.bf16.gmra.mrb[0].mxu0 %v72
    %v108 = vpop.f32.mrb[0].mxu0
    %v109 = vadd.f32 %v56, %v108
    %v110 = vpop.f32.mrb[0].mxu0
    %v111 = vpop.f32.mrb[0].mxu0
    %v112 = vadd.f32 %v56, %v111
    %v113 = vpop.f32.mrb[0].mxu0
    %114 = vdwg.mxu0
    %v115 = vpack.c.bf16 %v112, %v109
    %v117 = vunpack.c.l.b16 %v115
    %v118 = vunpack.c.h.b16 %v115
    %v119 = vpack.c.b16 %v117, %v117
    %v120 = vpack.c.b16 %v118, %v118
    %vm123 = vcmask 257024
    %124 = vst.msk [vmem:[#allocation7] sm:$0xf] %vm123, %v119
    %125 = vst.msk [vmem:[#allocation7 + $0x4] sm:$0xf] %vm123, %v120
    // Predicated region
    $region22: #{tpu_custom_call.1} parent=1 // pred_check
      _
    $region23: #{tpu_custom_call.1} parent=1 // pred_check_branch
      %127 = sbr.rel (0) target = $region25
    $region24: #{tpu_custom_call.1} parent=1 // pred_region
      %s129 = ssub.s32 128, 128
      %130 = vsyncadd [#allocation4], %s129
      %s131 = sshll.u32 [#allocation7], 4
      %s132 = int_to_ptr.vmem [resolvable:$true] %s131
      %137 = dma.vmem_to_hbm [thread:$0]  %s132, 128, %s3, [#allocation4], 64, 64, 4
    $region25: #{tpu_custom_call.1} parent=1 // pred_fallthru
      _
    // Predicated region
    $region26: #{tpu_custom_call.1} parent=1 // pred_check
      _
    $region27: #{tpu_custom_call.1} parent=1 // pred_check_branch
      %139 = sbr.rel (0) target = $region29
    $region28: #{tpu_custom_call.1} parent=1 // pred_region
      %140 = dma.done [#allocation4], 128
    $region29: #{tpu_custom_call.1} parent=1 // pred_fallthru
      _
    %141 = vsyncpa [#allocation3], 1
    %142 = vsyncpa [#allocation6], 1
    %143 = vsyncpa [#allocation4], 1

</llo_original>
